<compile_context>
chip_gen: v7x
topology: tpu7x:2x2x1
jax: 0.10.0
libtpu: 0.0.40
codegen_flags: <defaults>
</compile_context>

<pallas_src>
import functools

import jax
import jax.numpy as jnp
from jax.experimental import pallas as pl
from jax.experimental.pallas import tpu as pltpu


# ----------------------------- Pallas kernel -------------------------------

def _library_kernel(pred_ref, dx_ref, theta_ref, *, poly_order, diff_order):
    """Assemble one lane tile of theta.

    pred_ref : (1, TM)           u
    dx_ref   : (diff_order, TM)  [u_x, u_xx, ...]
    theta_ref: (n_theta, TM)     theta rows, i-major: row i*(D+1)+j = u^i * d^j u
    """
    u = pred_ref[...]                                    # (1, TM)
    dx = dx_ref[...]                                     # (D, TM)
    d1 = diff_order + 1

    # i = 0 block: [1, u_x, u_xx, ...]  (no multiplies by ones)
    theta_ref[0:1, :] = jnp.ones_like(u)
    theta_ref[1:d1, :] = dx

    # i >= 1 blocks: [u^i, u^i * u_x, u^i * u_xx, ...]
    pw = u
    for i in range(1, poly_order + 1):
        base = i * d1
        theta_ref[base:base + 1, :] = pw
        theta_ref[base + 1:base + d1, :] = pw * dx       # broadcast over D sublanes
        if i < poly_order:
            pw = pw * u


def _choose_tile(n_pad, max_tile=8192):
    """Largest lane tile (multiple of 128, divisor of n_pad), keeping >=2 grid
    steps when possible so the parallel axis can shard across TCs (v7x)."""
    candidates = [t for t in range(128, min(max_tile, n_pad) + 1, 128)
                  if n_pad % t == 0]
    tm = candidates[-1]
    if n_pad // tm < 2 and len(candidates) > 1:
        tm = candidates[-2]
    return tm


def library_theta_pallas(prediction, du_x_t, *, poly_order, diff_order,
                         max_tile=8192):
    """prediction: (N, 1), du_x_t: (diff_order, N) -> theta: (N, n_theta)."""
    n = prediction.shape[0]
    n_theta = (poly_order + 1) * (diff_order + 1)
    dtype = prediction.dtype

    # Lane-dense layout: samples on the lane (last) axis.
    pred_t = prediction.reshape(1, n)                    # (1, N) — free reshape

    # Pad the sample axis to a multiple of 128 if necessary.
    n_pad = ((n + 127) // 128) * 128
    if n_pad != n:
        pad = n_pad - n
        pred_t = jnp.pad(pred_t, ((0, 0), (0, pad)))
        du_x_t = jnp.pad(du_x_t, ((0, 0), (0, pad)))

    tm = _choose_tile(n_pad, max_tile)
    kernel = functools.partial(_library_kernel,
                               poly_order=poly_order, diff_order=diff_order)
    theta_t = pl.pallas_call(
        kernel,
        out_shape=jax.ShapeDtypeStruct((n_theta, n_pad), dtype),
        grid_spec=pltpu.PrefetchScalarGridSpec(
            num_scalar_prefetch=0,
            grid=(n_pad // tm,),
            in_specs=[pl.BlockSpec((1, tm), lambda i: (0, i)),
                      pl.BlockSpec((diff_order, tm), lambda i: (0, i))],
            out_specs=pl.BlockSpec((n_theta, tm), lambda i: (0, i))),
        compiler_params=pltpu.CompilerParams(
            dimension_semantics=("parallel",)),
    )(pred_t, du_x_t)

    if n_pad != n:
        theta_t = theta_t[:, :n]
    return theta_t.T                                     # (N, n_theta)


# ------------------------------ glue (JAX) ----------------------------------

HIDDEN = 32


def make_mlp_params(key, hidden=HIDDEN):
    k1, k2, k3, k4 = jax.random.split(key, 4)
    w1 = jax.random.normal(k1, (2, hidden), jnp.float32) * 0.5
    b1 = jax.random.normal(k2, (hidden,), jnp.float32) * 0.1
    w2 = jax.random.normal(k3, (hidden, 1), jnp.float32) * 0.5
    b2 = jax.random.normal(k4, (1,), jnp.float32) * 0.1
    return w1, b1, w2, b2


def mlp_predict(params, coords):
    w1, b1, w2, b2 = params
    return jnp.tanh(coords @ w1 + b1) @ w2 + b2


def _compute_derivatives(params, data):
    """prediction u, u_t, and lane-dense [u_x; u_xx] (t = col 0, x = col 1)."""
    prediction = mlp_predict(params, data)                        # (N, 1)
    single = lambda c: mlp_predict(params, c)[0]                  # (2,) -> scalar
    grad_fn = jax.jacfwd(single)                                  # (2,) -> (2,)
    jac = jax.vmap(grad_fn)(data)                                 # (N, 2)
    hess = jax.vmap(jax.jacfwd(grad_fn))(data)                    # (N, 2, 2)
    du_t = jac[:, 0:1]                                            # (N, 1)
    du_x_t = jnp.stack([jac[:, 1], hess[:, 1, 1]], axis=0)        # (2, N) lane-dense
    return prediction, du_t, du_x_t


def library_1D_in(input, poly_order=2, diff_order=2):
    """JAX/Pallas analogue of deepymod_torch's library_1D_in."""
    params, data = input
    # TODO(synk): torch.autograd.grad on tensors has no Pallas equivalent;
    # coordinate derivatives are computed with jax.jacfwd outside the kernel.
    assert diff_order == 2  # this synthetic driver builds u_x and u_xx
    prediction, du_t, du_x_t = _compute_derivatives(params, data)
    theta = library_theta_pallas(
        prediction, du_x_t, poly_order=poly_order, diff_order=diff_order)
    # time_deriv is exactly u_t — no kernel copy needed.
    return [du_t], theta


class Library:
    """JAX analogue of deepymod_torch.network.Library (forward only)."""

    def __init__(self, library_func, library_args=None):
        self.library_func = library_func
        self.library_args = dict(library_args or {})

    def __call__(self, input):
        time_deriv_list, theta = self.library_func(input, **self.library_args)
        return time_deriv_list, theta


# --------------------------------- main -------------------------------------

if __name__ == "__main__":
    key = jax.random.PRNGKey(0)
    k_data, k_params = jax.random.split(key)

    N = 256
    data = jax.random.uniform(k_data, (N, 2), jnp.float32)        # [t, x]
    params = make_mlp_params(k_params)

    lib = Library(library_1D_in, {"poly_order": 2, "diff_order": 2})
    time_deriv_list, theta = lib((params, data))
    jax.block_until_ready((time_deriv_list, theta))

    # Pure-JAX reference check of the Pallas-assembled outputs.
    pred_r, dut_r, dux_t_r = _compute_derivatives(params, data)
    dux_r = dux_t_r.T                                             # (N, 2)
    ones = jnp.ones_like(pred_r)
    poly_r = jnp.concatenate([ones, pred_r, pred_r * pred_r], axis=1)   # (N, 3)
    du_r = jnp.concatenate([ones, dux_r], axis=1)                       # (N, 3)
    theta_r = (poly_r[:, :, None] * du_r[:, None, :]).reshape(N, -1)    # (N, 9)

    assert theta.shape == (N, 9) and time_deriv_list[0].shape == (N, 1)
    assert jnp.allclose(time_deriv_list[0], dut_r, atol=1e-5, rtol=1e-5)
    assert jnp.allclose(theta, theta_r, atol=1e-5, rtol=1e-5)

    print("KERNEL_OK")
</pallas_src>

<mosaic_0001>
module attributes {stable_mosaic.version = 11 : i64} {
  func.func @_library_kernel(%arg0: i32, %arg1: memref<1x128xf32, #tpu.memory_space<vmem>>, %arg2: memref<2x128xf32, #tpu.memory_space<vmem>>, %arg3: memref<9x128xf32, #tpu.memory_space<vmem>>) attributes {dimension_semantics = [#tpu.dimension_semantics<parallel>], iteration_bounds = array<i64: 2>, scalar_prefetch = 0 : i64, scratch_operands = 0 : i64, tpu.core_type = #tpu.core_type<tc>, window_params = [{transform_indices = @transform_0, window_bounds = array<i64: 1, 128>}, {transform_indices = @transform_1, window_bounds = array<i64: 2, 128>}, {transform_indices = @transform_2, window_bounds = array<i64: 9, 128>}]} {
    %c0 = arith.constant 0 : index
    %c0_0 = arith.constant 0 : index
    %0 = vector.load %arg1[%c0, %c0_0] : memref<1x128xf32, #tpu.memory_space<vmem>>, vector<1x128xf32>
    %c0_1 = arith.constant 0 : index
    %c0_2 = arith.constant 0 : index
    %1 = vector.load %arg2[%c0_1, %c0_2] : memref<2x128xf32, #tpu.memory_space<vmem>>, vector<2x128xf32>
    %cst = arith.constant 1.000000e+00 : f32
    %2 = vector.broadcast %cst : f32 to vector<1x128xf32>
    %c0_3 = arith.constant 0 : index
    %c0_4 = arith.constant 0 : index
    %3 = vector.load %arg3[%c0_3, %c0_4] : memref<9x128xf32, #tpu.memory_space<vmem>>, vector<1x128xf32>
    tpu.vector_store %arg3[%c0_3, %c0_4], %2 {strides = array<i32>} : memref<9x128xf32, #tpu.memory_space<vmem>>, vector<1x128xf32>,
    %c1 = arith.constant 1 : index
    %c0_5 = arith.constant 0 : index
    %4 = vector.load %arg3[%c1, %c0_5] : memref<9x128xf32, #tpu.memory_space<vmem>>, vector<2x128xf32>
    tpu.vector_store %arg3[%c1, %c0_5], %1 {strides = array<i32>} : memref<9x128xf32, #tpu.memory_space<vmem>>, vector<2x128xf32>,
    %c3 = arith.constant 3 : index
    %c0_6 = arith.constant 0 : index
    %5 = vector.load %arg3[%c3, %c0_6] : memref<9x128xf32, #tpu.memory_space<vmem>>, vector<1x128xf32>
    tpu.vector_store %arg3[%c3, %c0_6], %0 {strides = array<i32>} : memref<9x128xf32, #tpu.memory_space<vmem>>, vector<1x128xf32>,
    %6 = vector.broadcast %0 : vector<1x128xf32> to vector<2x128xf32>
    %7 = arith.mulf %6, %1 : vector<2x128xf32>
    %c4 = arith.constant 4 : index
    %c0_7 = arith.constant 0 : index
    %8 = vector.load %arg3[%c4, %c0_7] : memref<9x128xf32, #tpu.memory_space<vmem>>, vector<2x128xf32>
    tpu.vector_store %arg3[%c4, %c0_7], %7 {strides = array<i32>} : memref<9x128xf32, #tpu.memory_space<vmem>>, vector<2x128xf32>,
    %9 = arith.mulf %0, %0 : vector<1x128xf32>
    %c6 = arith.constant 6 : index
    %c0_8 = arith.constant 0 : index
    %10 = vector.load %arg3[%c6, %c0_8] : memref<9x128xf32, #tpu.memory_space<vmem>>, vector<1x128xf32>
    tpu.vector_store %arg3[%c6, %c0_8], %9 {strides = array<i32>} : memref<9x128xf32, #tpu.memory_space<vmem>>, vector<1x128xf32>,
    %11 = vector.broadcast %9 : vector<1x128xf32> to vector<2x128xf32>
    %12 = arith.mulf %11, %1 : vector<2x128xf32>
    %c7 = arith.constant 7 : index
    %c0_9 = arith.constant 0 : index
    %13 = vector.load %arg3[%c7, %c0_9] : memref<9x128xf32, #tpu.memory_space<vmem>>, vector<2x128xf32>
    tpu.vector_store %arg3[%c7, %c0_9], %12 {strides = array<i32>} : memref<9x128xf32, #tpu.memory_space<vmem>>, vector<2x128xf32>,
    return
  }
  func.func @transform_0(%arg0: i32) -> (i32, i32) {
    %c0_i32 = arith.constant 0 : i32
    %c0_i32_0 = arith.constant 0 : i32
    return %c0_i32, %arg0 : i32, i32
  }
  func.func @transform_1(%arg0: i32) -> (i32, i32) {
    %c0_i32 = arith.constant 0 : i32
    %c0_i32_0 = arith.constant 0 : i32
    return %c0_i32, %arg0 : i32, i32
  }
  func.func @transform_2(%arg0: i32) -> (i32, i32) {
    %c0_i32 = arith.constant 0 : i32
    %c0_i32_0 = arith.constant 0 : i32
    return %c0_i32, %arg0 : i32, i32
  }
}

</mosaic_0001>

<llo_original>
// kernel: tpu_custom_call.1
$region0: #{tpu_custom_call.1}
  #allocation0 [shape = 'u32[]', space=smem, size = 0x4, offset = 0x4, fixed_abs, tag = 'smem constant byte address 0x4 - core index']
  #allocation1 [shape = 'u32[144,128]{1,0:T(1,128)}', space=vmem, size = 0x12000, scoped, tag = 'internal scratch']
  %s0 = inlined_call_operand.hbm [shape: f32[1,256], index: 0, kind: input, shape index: {}]
  %s1 = inlined_call_operand.hbm [shape: f32[2,256], index: 1, kind: input, shape index: {}]
  %s2 = inlined_call_operand.hbm [shape: f32[9,256], index: 2, kind: output, shape index: {}]
  %s3 = sld [smem:[#allocation0]]
  $region49: #{tpu_custom_call.1} parent=0
    _
  %s5 = ssub.s32 1, %s3
  %s6 = scalar_select 0, %s5, %s3
  $region1: #{tpu_custom_call.1} parent=0
    #allocation2 [shape = 'u8[1024]{0}', space=vmem, size = 0x400, scoped, tag = 'input window, operand 0']
    #allocation3 [shape = 's32[2]{0}', space=sflag, size = 0x8, scoped, tag = 'scoped memory for tpu_custom_call.1']
    #allocation4 [shape = 's32[2]{0}', space=sflag, size = 0x8, scoped, tag = 'scoped memory for tpu_custom_call.1']
    #allocation5 [shape = 'u8[2048]{0}', space=vmem, size = 0x800, scoped, tag = 'input window, operand 1']
    #allocation6 [shape = 's32[2]{0}', space=sflag, size = 0x8, scoped, tag = 'scoped memory for tpu_custom_call.1']
    #allocation7 [shape = 'u8[16384]{0}', space=vmem, size = 0x4000, scoped, tag = 'output window, operand 0']
    %7 = vsyncpa [#allocation3], 0
    %s8 = scalar_lea.sflag [#allocation3], 1
    %9 = vsyncpa %s8, 0
    %10 = vsyncpa [#allocation6], 0
    %s11 = scalar_lea.sflag [#allocation6], 1
    %12 = vsyncpa %s11, 0
    %13 = vsyncpa [#allocation4], 0
    %s14 = scalar_lea.sflag [#allocation4], 1
    %15 = vsyncpa %s14, 0
    loop: start=0, step=1, limit=4
    $region2: #{tpu_custom_call.1} parent=1 // loop_pre_header
      _
    $region3: #{tpu_custom_call.1} parent=1 // loop_header
      %s17 = sphi 0, %s21
      %p18 = scmp.ge.s32.totalorder %s17, 4
      %s27 = sphi 0, %s29
      %s30 = sphi 0, %s27
      %s31 = sphi 0, %s30
      %s47 = sphi 0, %s31
      %s53 = sphi 0, %s55
      %s56 = sphi 0, %s53
      %s57 = sphi 0, %s56
      %s73 = sphi 0, %s57
      %s79 = sphi 0, %s81
      %s82 = sphi 0, %s79
      %s83 = sphi 0, %s82
      %s99 = sphi 0, %s83
    $region4: #{tpu_custom_call.1} parent=1 // loop_header_branch
      %20 = sbr.rel (%p18) target = $region8
    $region5: #{tpu_custom_call.1} parent=1 // loop_body
      %s22 = ssub.s32 %s17, 1
      %s23 = ssub.s32 %s17, 2
      %s24 = sadd.s32 %s17, 1
      %s25 = ssub.s32 %s17, %s24
      %p26 = scmp.eq.s32.totalorder %s25, 0
      %s28 = sadd.s32 %s27, 1
      %s29 = scalar_select %p26, %s27, %s28
      %p32 = pneg %p26
      %p33 = scmp.eq.s32.totalorder %s17, 1
      %p34 = por %p32, %p33
      %p35 = scmp.ne.s32.totalorder %s27, %s30
      %p36 = scmp.eq.s32.totalorder %s17, 0
      %p37 = por %p35, %p36
      %p38 = scmp.ne.s32.totalorder %s27, %s30
      %p39 = scmp.eq.s32.totalorder %s22, 1
      %p40 = por %p38, %p39
      %p41 = scmp.ne.s32.totalorder %s30, %s31
      %p42 = scmp.eq.s32.totalorder %s22, 0
      %p43 = por %p41, %p42
      %p44 = scmp.ne.s32.totalorder %s30, %s31
      %p45 = scmp.eq.s32.totalorder %s23, 1
      %p46 = por %p44, %p45
      %p48 = scmp.ne.s32.totalorder %s31, %s47
      %p49 = scmp.eq.s32.totalorder %s23, 0
      %p50 = por %p48, %p49
      %s51 = ssub.s32 %s17, %s24
      %p52 = scmp.eq.s32.totalorder %s51, 0
      %s54 = sadd.s32 %s53, 1
      %s55 = scalar_select %p52, %s53, %s54
      %p58 = pneg %p52
      %p59 = scmp.eq.s32.totalorder %s17, 1
      %p60 = por %p58, %p59
      %p61 = scmp.ne.s32.totalorder %s53, %s56
      %p62 = scmp.eq.s32.totalorder %s17, 0
      %p63 = por %p61, %p62
      %p64 = scmp.ne.s32.totalorder %s53, %s56
      %p65 = scmp.eq.s32.totalorder %s22, 1
      %p66 = por %p64, %p65
      %p67 = scmp.ne.s32.totalorder %s56, %s57
      %p68 = scmp.eq.s32.totalorder %s22, 0
      %p69 = por %p67, %p68
      %p70 = scmp.ne.s32.totalorder %s56, %s57
      %p71 = scmp.eq.s32.totalorder %s23, 1
      %p72 = por %p70, %p71
      %p74 = scmp.ne.s32.totalorder %s57, %s73
      %p75 = scmp.eq.s32.totalorder %s23, 0
      %p76 = por %p74, %p75
      %s77 = ssub.s32 %s17, %s24
      %p78 = scmp.eq.s32.totalorder %s77, 0
      %s80 = sadd.s32 %s79, 1
      %s81 = scalar_select %p78, %s79, %s80
      %p84 = pneg %p78
      %p85 = scmp.eq.s32.totalorder %s17, 1
      %p86 = por %p84, %p85
      %p87 = scmp.ne.s32.totalorder %s79, %s82
      %p88 = scmp.eq.s32.totalorder %s17, 0
      %p89 = por %p87, %p88
      %p90 = scmp.ne.s32.totalorder %s79, %s82
      %p91 = scmp.eq.s32.totalorder %s22, 1
      %p92 = por %p90, %p91
      %p93 = scmp.ne.s32.totalorder %s82, %s83
      %p94 = scmp.eq.s32.totalorder %s22, 0
      %p95 = por %p93, %p94
      %p96 = scmp.ne.s32.totalorder %s82, %s83
      %p97 = scmp.eq.s32.totalorder %s23, 1
      %p98 = por %p96, %p97
      %p100 = scmp.ne.s32.totalorder %s83, %s99
      %p101 = scmp.eq.s32.totalorder %s23, 0
      %p102 = por %p100, %p101
      %p103 = scmp.le.s32.totalorder 1, %s17
      %p104 = scmp.lt.s32.totalorder %s17, 3
      %p105 = pnand %p103, %p104
      %p106 = pneg %p105
      // Predicated region
      $region9: #{tpu_custom_call.1} parent=5 // pred_check
        _
      $region10: #{tpu_custom_call.1} parent=5 // pred_check_branch
        %108 = sbr.rel (%p105) target = $region12
      $region11: #{tpu_custom_call.1} parent=5 // pred_region
        %s109 = ssub.s32 %s17, 1
      $region12: #{tpu_custom_call.1} parent=5 // pred_fallthru
        _
      %p110 = scmp.lt.s32.totalorder %s17, 2
      // Predicated region
      $region13: #{tpu_custom_call.1} parent=5 // pred_check
        %p111 = pneg %p110
      $region14: #{tpu_custom_call.1} parent=5 // pred_check_branch
        %113 = sbr.rel (%p111) target = $region16
      $region15: #{tpu_custom_call.1} parent=5 // pred_region
        // Predicated region
        $region17: #{tpu_custom_call.1} parent=15 // pred_check
          %p114 = pneg %p37
        $region18: #{tpu_custom_call.1} parent=15 // pred_check_branch
          %116 = sbr.rel (%p114) target = $region20
        $region19: #{tpu_custom_call.1} parent=15 // pred_region
          %s117 = sand.u32 %s27, 1
          %s118 = scalar_lea.sflag [#allocation3], %s117
          %s119 = sand.u32 %s27, 1
          %s120 = scalar_lea.vmem [#allocation2], %s119
          %s122 = ssub.s32 16, 16
          %123 = vsyncadd %s118, %s122
          %s124 = smul.addr %s17, 16
          %s125 = scalar_lea.hbm %s0, %s124
          %s127 = sshll.u32 %s120, 4
          %s128 = int_to_ptr.vmem [resolvable:$true] %s127
          %130 = dma.hbm_to_vmem [thread:$0]  %s125, 16, %s128, %s118
        $region20: #{tpu_custom_call.1} parent=15 // pred_fallthru
          _
        // Predicated region
        $region21: #{tpu_custom_call.1} parent=15 // pred_check
          %p131 = pneg %p63
        $region22: #{tpu_custom_call.1} parent=15 // pred_check_branch
          %133 = sbr.rel (%p131) target = $region24
        $region23: #{tpu_custom_call.1} parent=15 // pred_region
          %s134 = sand.u32 %s53, 1
          %s135 = scalar_lea.sflag [#allocation6], %s134
          %s136 = sand.u32 %s53, 1
          %s137 = smul.addr %s136, 2
          %s138 = scalar_lea.vmem [#allocation5], %s137
          %s140 = ssub.s32 32, 32
          %141 = vsyncadd %s135, %s140
          %s142 = smul.addr %s17, 32
          %s143 = scalar_lea.hbm %s1, %s142
          %s145 = sshll.u32 %s138, 4
          %s146 = int_to_ptr.vmem [resolvable:$true] %s145
          %148 = dma.hbm_to_vmem [thread:$0]  %s143, 32, %s146, %s135
        $region24: #{tpu_custom_call.1} parent=15 // pred_fallthru
          _
      $region16: #{tpu_custom_call.1} parent=5 // pred_fallthru
        _
      %p149 = scmp.le.s32.totalorder 1, %s17
      %p150 = scmp.lt.s32.totalorder %s17, 3
      %p151 = pnand %p149, %p150
      %p152 = pneg %p151
      // Predicated region
      $region25: #{tpu_custom_call.1} parent=5 // pred_check
        _
      $region26: #{tpu_custom_call.1} parent=5 // pred_check_branch
        %154 = sbr.rel (%p151) target = $region28
      $region27: #{tpu_custom_call.1} parent=5 // pred_region
        %s155 = ssub.s32 %s17, 1
        %s156 = sand.u32 %s30, 1
        %s157 = scalar_lea.sflag [#allocation3], %s156
        %s158 = sand.u32 %s30, 1
        %s159 = scalar_lea.vmem [#allocation2], %s158
        // Predicated region
        $region29: #{tpu_custom_call.1} parent=27 // pred_check
          %p160 = pneg %p43
        $region30: #{tpu_custom_call.1} parent=27 // pred_check_branch
          %162 = sbr.rel (%p160) target = $region32
        $region31: #{tpu_custom_call.1} parent=27 // pred_region
          %163 = dma.done %s157, 16
        $region32: #{tpu_custom_call.1} parent=27 // pred_fallthru
          _
        %s164 = sand.u32 %s56, 1
        %s165 = scalar_lea.sflag [#allocation6], %s164
        %s166 = sand.u32 %s56, 1
        %s167 = smul.addr %s166, 2
        %s168 = scalar_lea.vmem [#allocation5], %s167
        // Predicated region
        $region33: #{tpu_custom_call.1} parent=27 // pred_check
          %p169 = pneg %p69
        $region34: #{tpu_custom_call.1} parent=27 // pred_check_branch
          %171 = sbr.rel (%p169) target = $region36
        $region35: #{tpu_custom_call.1} parent=27 // pred_region
          %172 = dma.done %s165, 32
        $region36: #{tpu_custom_call.1} parent=27 // pred_fallthru
          _
        %s173 = sand.u32 %s30, 1
        %s174 = scalar_lea.sflag [#allocation3], %s173
        %s175 = sand.u32 %s30, 1
        %s176 = scalar_lea.vmem [#allocation2], %s175
        %p177 = pneg %p43
        %p178 = pneg %p40
        %s179 = sand.u32 %s56, 1
        %s180 = scalar_lea.sflag [#allocation6], %s179
        %s181 = sand.u32 %s56, 1
        %s182 = smul.addr %s181, 2
        %s183 = scalar_lea.vmem [#allocation5], %s182
        %p184 = pneg %p69
        %p185 = pneg %p66
        %p186 = pneg %p95
        %p187 = pneg %p92
        %s188 = sand.u32 %s82, 1
        %s189 = scalar_lea.sflag [#allocation4], %s188
        %s190 = sand.u32 %s82, 1
        %s191 = smul.addr %s190, 16
        %s192 = scalar_lea.vmem [#allocation7], %s191
        %v193 = vld [vmem:[%s159] sm:$0x1]
        %v194 = vld [vmem:[%s168] sm:$0x3]
        %195 = vst [vmem:[%s192] sm:$0x1] 1.0
        %196 = vst [vmem:[%s192 + $0x1] sm:$0x3] %v194
        %197 = vst [vmem:[%s192 + $0x3] sm:$0x1] %v193
        %v199 = vlaneseq
        %v200 = vshrl.u32 %v199, 7
        %v201 = vsub.s32 0, %v200
        %v202 = vrot.slane %v193, %v201
        %v204 = vmul.f32 %v202, %v194
        %205 = vst [vmem:[%s192 + $0x4] sm:$0x3] %v204
        %v206 = vmul.f32 %v193, %v193
        %207 = vst [vmem:[%s192 + $0x6] sm:$0x1] %v206
        %v209 = vlaneseq
        %v210 = vshrl.u32 %v209, 7
        %v211 = vsub.s32 0, %v210
        %v212 = vrot.slane %v206, %v211
        %v214 = vmul.f32 %v212, %v194
        %215 = vst [vmem:[%s192 + $0x7] sm:$0x3] %v214
        %s216 = sand.u32 %s82, 1
        %s217 = scalar_lea.sflag [#allocation4], %s216
        %s218 = sand.u32 %s82, 1
        %s219 = smul.addr %s218, 16
        %s220 = scalar_lea.vmem [#allocation7], %s219
        // Predicated region
        $region37: #{tpu_custom_call.1} parent=27 // pred_check
          %p221 = pneg %p92
        $region38: #{tpu_custom_call.1} parent=27 // pred_check_branch
          %223 = sbr.rel (%p221) target = $region40
        $region39: #{tpu_custom_call.1} parent=27 // pred_region
          %s225 = ssub.s32 256, 256
          %226 = vsyncadd %s217, %s225
          %s227 = smul.addr %s22, 128
          %s228 = scalar_lea.hbm %s2, %s227
          %s229 = sshll.u32 %s220, 4
          %s230 = int_to_ptr.vmem [resolvable:$true] %s229
          %235 = dma.vmem_to_hbm [thread:$0]  %s230, 256, %s228, %s217, 128, 256, 8
        $region40: #{tpu_custom_call.1} parent=27 // pred_fallthru
          _
      $region28: #{tpu_custom_call.1} parent=5 // pred_fallthru
        _
      %p236 = scmp.le.s32.totalorder 2, %s17
      // Predicated region
      $region41: #{tpu_custom_call.1} parent=5 // pred_check
        %p237 = pneg %p236
      $region42: #{tpu_custom_call.1} parent=5 // pred_check_branch
        %239 = sbr.rel (%p237) target = $region44
      $region43: #{tpu_custom_call.1} parent=5 // pred_region
        %s240 = ssub.s32 %s17, 2
        // Predicated region
        $region45: #{tpu_custom_call.1} parent=43 // pred_check
          %p241 = pneg %p98
        $region46: #{tpu_custom_call.1} parent=43 // pred_check_branch
          %243 = sbr.rel (%p241) target = $region48
        $region47: #{tpu_custom_call.1} parent=43 // pred_region
          %s244 = sand.u32 %s83, 1
          %s245 = scalar_lea.sflag [#allocation4], %s244
          %s246 = sand.u32 %s83, 1
          %s247 = smul.addr %s246, 16
          %s248 = scalar_lea.vmem [#allocation7], %s247
          %249 = dma.done %s245, 256
        $region48: #{tpu_custom_call.1} parent=43 // pred_fallthru
          _
      $region44: #{tpu_custom_call.1} parent=5 // pred_fallthru
        _
    $region6: #{tpu_custom_call.1} parent=1 // loop_footer
      %s21 = sadd.s32 1, %s17
    $region7: #{tpu_custom_call.1} parent=1 // loop_footer_branch
      %16 = sbr.rel target = $region3
    $region8: #{tpu_custom_call.1} parent=1 // loop_exit
      _
    %250 = vsyncpa [#allocation3], 1
    %s251 = scalar_lea.sflag [#allocation3], 1
    %252 = vsyncpa %s251, 1
    %253 = vsyncpa [#allocation6], 1
    %s254 = scalar_lea.sflag [#allocation6], 1
    %255 = vsyncpa %s254, 1
    %256 = vsyncpa [#allocation4], 1
    %s257 = scalar_lea.sflag [#allocation4], 1
    %258 = vsyncpa %s257, 1

</llo_original>
